<compile_context>
chip_gen: v7x
topology: tpu7x:2x2x1
jax: 0.10.0
libtpu: 0.0.40
codegen_flags: <defaults>
</compile_context>

<pallas_src>
from functools import partial

import jax
import jax.numpy as jnp
from jax.experimental import pallas as pl
from jax.experimental.pallas import tpu as pltpu

LOG_STD_MAX = 2.0
LOG_STD_MIN = -5.0

A_PAD = 128  # per-head output width padded to one full lane group


def _round_up(x, m):
    return ((x + m - 1) // m) * m


def actor_kernel(x_ref, w1_ref, b1_ref, w2_ref, b2_ref, wh_ref, bh_ref,
                 mean_ref, logstd_ref):
    # fc1 + relu  (bf16 operands, f32 accumulation; elementwise math in f32)
    h1 = jnp.dot(x_ref[...], w1_ref[...], preferred_element_type=jnp.float32)
    h1 = jnp.maximum(h1 + b1_ref[...], 0.0).astype(jnp.bfloat16)
    # fc2 + relu
    h2 = jnp.dot(h1, w2_ref[...], preferred_element_type=jnp.float32)
    h2 = jnp.maximum(h2 + b2_ref[...], 0.0).astype(jnp.bfloat16)
    # fused heads: one matmul against [wm | ws] padded to (hidden, 2*128)
    head = jnp.dot(h2, wh_ref[...], preferred_element_type=jnp.float32)
    head = head + bh_ref[...]
    # mean head (first 128 lanes) -- lane-aligned slice, no copy
    mean_ref[...] = head[:, :A_PAD]
    # logstd head (last 128 lanes): tanh squash + rescale into [MIN, MAX]
    ls = jnp.tanh(head[:, A_PAD:])
    logstd_ref[...] = LOG_STD_MIN + 0.5 * (LOG_STD_MAX - LOG_STD_MIN) * (ls + 1.0)


@partial(jax.jit, static_argnames=("tm",))
def _actor_forward_impl(x, params, tm):
    B, obs_dim = x.shape
    hidden = params["w1"].shape[1]
    act_dim = params["wm"].shape[1]

    # --- fuse + lane-pad the two head layers -> (hidden, 2*A_PAD) -----------
    wh = jnp.zeros((hidden, 2 * A_PAD), jnp.float32)
    wh = wh.at[:, :act_dim].set(params["wm"])
    wh = wh.at[:, A_PAD:A_PAD + act_dim].set(params["ws"])
    bh = jnp.zeros((1, 2 * A_PAD), jnp.float32)
    bh = bh.at[:, :act_dim].set(params["bm"])
    bh = bh.at[:, A_PAD:A_PAD + act_dim].set(params["bs"])

    # --- batch tiling / padding ---------------------------------------------
    tm_eff = min(tm, _round_up(B, 8))           # 8-row sublane alignment
    b_pad = _round_up(B, tm_eff)
    x_pad = jnp.zeros((b_pad, obs_dim), jnp.float32).at[:B].set(x)

    # --- bf16 matmul operands, f32 biases -----------------------------------
    x_bf = x_pad.astype(jnp.bfloat16)
    w1 = params["w1"].astype(jnp.bfloat16)
    w2 = params["w2"].astype(jnp.bfloat16)
    wh = wh.astype(jnp.bfloat16)
    b1 = params["b1"]
    b2 = params["b2"]

    grid = (b_pad // tm_eff,)

    in_specs = [
        pl.BlockSpec((tm_eff, obs_dim), lambda i: (i, 0)),      # x: tiled on batch
        pl.BlockSpec((obs_dim, hidden), lambda i: (0, 0)),      # w1: resident
        pl.BlockSpec((1, hidden), lambda i: (0, 0)),            # b1
        pl.BlockSpec((hidden, hidden), lambda i: (0, 0)),       # w2
        pl.BlockSpec((1, hidden), lambda i: (0, 0)),            # b2
        pl.BlockSpec((hidden, 2 * A_PAD), lambda i: (0, 0)),    # fused head W
        pl.BlockSpec((1, 2 * A_PAD), lambda i: (0, 0)),         # fused head b
    ]
    out_specs = (
        pl.BlockSpec((tm_eff, A_PAD), lambda i: (i, 0)),        # mean (padded)
        pl.BlockSpec((tm_eff, A_PAD), lambda i: (i, 0)),        # log_std (padded)
    )

    mean_pad, logstd_pad = pl.pallas_call(
        actor_kernel,
        out_shape=(jax.ShapeDtypeStruct((b_pad, A_PAD), jnp.float32),
                   jax.ShapeDtypeStruct((b_pad, A_PAD), jnp.float32)),
        grid=grid,
        in_specs=in_specs,
        out_specs=out_specs,
        compiler_params=pltpu.CompilerParams(
            dimension_semantics=("parallel",)),
    )(x_bf, w1, b1, w2, b2, wh, bh)

    # slice padded slabs back to the logical shapes
    return mean_pad[:B, :act_dim], logstd_pad[:B, :act_dim]


def actor_forward(x, params, *, tm=256):
    """x: (B, obs_dim) float32.  params: dict of f32 weights/biases.

    tm: batch tile (multiple of 8). 256 is a good default for v6e/v7x; 128 on
    v5e. Small batches collapse to a single 8-row-aligned tile.
    """
    return _actor_forward_impl(x, params, tm)


def init_params(key, obs_dim, act_dim, hidden=256):
    """Deterministic init mimicking torch.nn.Linear default (uniform +-1/sqrt(fan_in))."""
    ks = jax.random.split(key, 8)

    def lin(kw, kb, fan_in, fan_out):
        bound = 1.0 / jnp.sqrt(jnp.float32(fan_in))
        w = jax.random.uniform(kw, (fan_in, fan_out), jnp.float32, -bound, bound)
        b = jax.random.uniform(kb, (1, fan_out), jnp.float32, -bound, bound)
        return w, b

    w1, b1 = lin(ks[0], ks[1], obs_dim, hidden)
    w2, b2 = lin(ks[2], ks[3], hidden, hidden)
    wm, bm = lin(ks[4], ks[5], hidden, act_dim)
    ws, bs = lin(ks[6], ks[7], hidden, act_dim)
    return {"w1": w1, "b1": b1, "w2": w2, "b2": b2,
            "wm": wm, "bm": bm, "ws": ws, "bs": bs}


def actor_forward_ref(x, p):
    """Pure-JAX reference using the same bf16-rounded matmul operands."""
    def bf(a):
        return a.astype(jnp.bfloat16).astype(jnp.float32)

    h1 = jnp.maximum(bf(x) @ bf(p["w1"]) + p["b1"], 0.0)
    h2 = jnp.maximum(bf(h1) @ bf(p["w2"]) + p["b2"], 0.0)
    mean = bf(h2) @ bf(p["wm"]) + p["bm"]
    ls = jnp.tanh(bf(h2) @ bf(p["ws"]) + p["bs"])
    ls = LOG_STD_MIN + 0.5 * (LOG_STD_MAX - LOG_STD_MIN) * (ls + 1.0)
    return mean, ls


def _check(batch, obs_dim, act_dim, key, tm):
    k_x, k_p = jax.random.split(key)
    x = jax.random.normal(k_x, (batch, obs_dim), jnp.float32)
    params = init_params(k_p, obs_dim, act_dim)

    mean, log_std = actor_forward(x, params, tm=tm)
    mean = jax.block_until_ready(mean)
    log_std = jax.block_until_ready(log_std)

    mean_ref, log_std_ref = actor_forward_ref(x, params)
    assert mean.shape == (batch, act_dim) and log_std.shape == (batch, act_dim)
    assert jnp.allclose(mean, mean_ref, atol=1e-2, rtol=1e-2)
    assert jnp.allclose(log_std, log_std_ref, atol=1e-2, rtol=1e-2)
    assert bool(jnp.all(log_std >= LOG_STD_MIN)) and bool(jnp.all(log_std <= LOG_STD_MAX))


if __name__ == "__main__":
    key = jax.random.PRNGKey(0)
    k1, k2 = jax.random.split(key)

    # small synthetic env shapes (single-tile path)
    _check(batch=2, obs_dim=8, act_dim=4, key=k1, tm=256)
    # multi-tile grid path with batch padding (exercises pipelining / padding)
    _check(batch=300, obs_dim=8, act_dim=4, key=k2, tm=128)

    # TODO(synk): get_action's Normal.rsample / log_prob sampling path is host-side
    # distribution logic and is intentionally left outside the kernel.
    print("KERNEL_OK")
</pallas_src>

<mosaic_0001>
module attributes {stable_mosaic.version = 11 : i64} {
  func.func @actor_kernel(%arg0: i32, %arg1: memref<8x8xbf16, #tpu.memory_space<vmem>>, %arg2: memref<8x256xbf16, #tpu.memory_space<vmem>>, %arg3: memref<1x256xf32, #tpu.memory_space<vmem>>, %arg4: memref<256x256xbf16, #tpu.memory_space<vmem>>, %arg5: memref<1x256xf32, #tpu.memory_space<vmem>>, %arg6: memref<256x256xbf16, #tpu.memory_space<vmem>>, %arg7: memref<1x256xf32, #tpu.memory_space<vmem>>, %arg8: memref<8x128xf32, #tpu.memory_space<vmem>>, %arg9: memref<8x128xf32, #tpu.memory_space<vmem>>) attributes {dimension_semantics = [#tpu.dimension_semantics<parallel>], iteration_bounds = array<i64: 1>, scalar_prefetch = 0 : i64, scratch_operands = 0 : i64, tpu.core_type = #tpu.core_type<tc>, window_params = [{transform_indices = @transform_0, window_bounds = array<i64: 8, 8>}, {pipeline_mode = #tpu.pipeline_mode<synchronous>, transform_indices = @transform_1, window_bounds = array<i64: 8, 256>}, {pipeline_mode = #tpu.pipeline_mode<synchronous>, transform_indices = @transform_2, window_bounds = array<i64: 1, 256>}, {pipeline_mode = #tpu.pipeline_mode<synchronous>, transform_indices = @transform_3, window_bounds = array<i64: 256, 256>}, {pipeline_mode = #tpu.pipeline_mode<synchronous>, transform_indices = @transform_4, window_bounds = array<i64: 1, 256>}, {pipeline_mode = #tpu.pipeline_mode<synchronous>, transform_indices = @transform_5, window_bounds = array<i64: 256, 256>}, {pipeline_mode = #tpu.pipeline_mode<synchronous>, transform_indices = @transform_6, window_bounds = array<i64: 1, 256>}, {transform_indices = @transform_7, window_bounds = array<i64: 8, 128>}, {transform_indices = @transform_8, window_bounds = array<i64: 8, 128>}]} {
    %c0 = arith.constant 0 : index
    %c0_0 = arith.constant 0 : index
    %0 = vector.load %arg1[%c0, %c0_0] : memref<8x8xbf16, #tpu.memory_space<vmem>>, vector<8x8xbf16>
    %c0_1 = arith.constant 0 : index
    %c0_2 = arith.constant 0 : index
    %1 = vector.load %arg2[%c0_1, %c0_2] : memref<8x256xbf16, #tpu.memory_space<vmem>>, vector<8x256xbf16>
    %cst = arith.constant dense<0.000000e+00> : vector<8x256xf32>
    %2 = tpu.matmul %0, %1, %cst {dimension_numbers = #tpu.dot_dimension_numbers<[1], [0], [0], [1], [0, 0, 1, 1], [], []>} : vector<8x8xbf16>, vector<8x256xbf16>, vector<8x256xf32> -> vector<8x256xf32>
    %c0_3 = arith.constant 0 : index
    %c0_4 = arith.constant 0 : index
    %3 = vector.load %arg3[%c0_3, %c0_4] : memref<1x256xf32, #tpu.memory_space<vmem>>, vector<1x256xf32>
    %4 = vector.broadcast %3 : vector<1x256xf32> to vector<8x256xf32>
    %5 = arith.addf %2, %4 : vector<8x256xf32>
    %cst_5 = arith.constant 0.000000e+00 : f32
    %6 = vector.broadcast %cst_5 : f32 to vector<8x256xf32>
    %7 = arith.maximumf %5, %6 : vector<8x256xf32>
    %8 = arith.truncf %7 : vector<8x256xf32> to vector<8x256xbf16>
    %c0_6 = arith.constant 0 : index
    %c0_7 = arith.constant 0 : index
    %9 = vector.load %arg4[%c0_6, %c0_7] : memref<256x256xbf16, #tpu.memory_space<vmem>>, vector<256x256xbf16>
    %cst_8 = arith.constant dense<0.000000e+00> : vector<8x256xf32>
    %10 = tpu.matmul %8, %9, %cst_8 {dimension_numbers = #tpu.dot_dimension_numbers<[1], [0], [0], [1], [0, 0, 1, 1], [], []>} : vector<8x256xbf16>, vector<256x256xbf16>, vector<8x256xf32> -> vector<8x256xf32>
    %c0_9 = arith.constant 0 : index
    %c0_10 = arith.constant 0 : index
    %11 = vector.load %arg5[%c0_9, %c0_10] : memref<1x256xf32, #tpu.memory_space<vmem>>, vector<1x256xf32>
    %12 = vector.broadcast %11 : vector<1x256xf32> to vector<8x256xf32>
    %13 = arith.addf %10, %12 : vector<8x256xf32>
    %cst_11 = arith.constant 0.000000e+00 : f32
    %14 = vector.broadcast %cst_11 : f32 to vector<8x256xf32>
    %15 = arith.maximumf %13, %14 : vector<8x256xf32>
    %16 = arith.truncf %15 : vector<8x256xf32> to vector<8x256xbf16>
    %c0_12 = arith.constant 0 : index
    %c0_13 = arith.constant 0 : index
    %17 = vector.load %arg6[%c0_12, %c0_13] : memref<256x256xbf16, #tpu.memory_space<vmem>>, vector<256x256xbf16>
    %cst_14 = arith.constant dense<0.000000e+00> : vector<8x256xf32>
    %18 = tpu.matmul %16, %17, %cst_14 {dimension_numbers = #tpu.dot_dimension_numbers<[1], [0], [0], [1], [0, 0, 1, 1], [], []>} : vector<8x256xbf16>, vector<256x256xbf16>, vector<8x256xf32> -> vector<8x256xf32>
    %c0_15 = arith.constant 0 : index
    %c0_16 = arith.constant 0 : index
    %19 = vector.load %arg7[%c0_15, %c0_16] : memref<1x256xf32, #tpu.memory_space<vmem>>, vector<1x256xf32>
    %20 = vector.broadcast %19 : vector<1x256xf32> to vector<8x256xf32>
    %21 = arith.addf %18, %20 : vector<8x256xf32>
    %22 = vector.extract_strided_slice %21 {offsets = [0, 0], sizes = [8, 128], strides = [1, 1]} : vector<8x256xf32> to vector<8x128xf32>
    %c0_17 = arith.constant 0 : index
    %c0_18 = arith.constant 0 : index
    %23 = vector.load %arg8[%c0_17, %c0_18] : memref<8x128xf32, #tpu.memory_space<vmem>>, vector<8x128xf32>
    tpu.vector_store %arg8[%c0_17, %c0_18], %22 {strides = array<i32>} : memref<8x128xf32, #tpu.memory_space<vmem>>, vector<8x128xf32>,
    %24 = vector.extract_strided_slice %21 {offsets = [0, 128], sizes = [8, 128], strides = [1, 1]} : vector<8x256xf32> to vector<8x128xf32>
    %25 = math.tanh %24 : vector<8x128xf32>
    %cst_19 = arith.constant 1.000000e+00 : f32
    %26 = vector.broadcast %cst_19 : f32 to vector<8x128xf32>
    %27 = arith.addf %25, %26 : vector<8x128xf32>
    %cst_20 = arith.constant 3.500000e+00 : f32
    %28 = vector.broadcast %cst_20 : f32 to vector<8x128xf32>
    %29 = arith.mulf %28, %27 : vector<8x128xf32>
    %cst_21 = arith.constant -5.000000e+00 : f32
    %30 = vector.broadcast %cst_21 : f32 to vector<8x128xf32>
    %31 = arith.addf %30, %29 : vector<8x128xf32>
    %c0_22 = arith.constant 0 : index
    %c0_23 = arith.constant 0 : index
    %32 = vector.load %arg9[%c0_22, %c0_23] : memref<8x128xf32, #tpu.memory_space<vmem>>, vector<8x128xf32>
    tpu.vector_store %arg9[%c0_22, %c0_23], %31 {strides = array<i32>} : memref<8x128xf32, #tpu.memory_space<vmem>>, vector<8x128xf32>,
    return
  }
  func.func @transform_0(%arg0: i32) -> (i32, i32) {
    %c0_i32 = arith.constant 0 : i32
    %c0_i32_0 = arith.constant 0 : i32
    return %arg0, %c0_i32 : i32, i32
  }
  func.func @transform_1(%arg0: i32) -> (i32, i32) {
    %c0_i32 = arith.constant 0 : i32
    %c0_i32_0 = arith.constant 0 : i32
    %c0_i32_1 = arith.constant 0 : i32
    return %c0_i32, %c0_i32_0 : i32, i32
  }
  func.func @transform_2(%arg0: i32) -> (i32, i32) {
    %c0_i32 = arith.constant 0 : i32
    %c0_i32_0 = arith.constant 0 : i32
    %c0_i32_1 = arith.constant 0 : i32
    return %c0_i32, %c0_i32_0 : i32, i32
  }
  func.func @transform_3(%arg0: i32) -> (i32, i32) {
    %c0_i32 = arith.constant 0 : i32
    %c0_i32_0 = arith.constant 0 : i32
    %c0_i32_1 = arith.constant 0 : i32
    return %c0_i32, %c0_i32_0 : i32, i32
  }
  func.func @transform_4(%arg0: i32) -> (i32, i32) {
    %c0_i32 = arith.constant 0 : i32
    %c0_i32_0 = arith.constant 0 : i32
    %c0_i32_1 = arith.constant 0 : i32
    return %c0_i32, %c0_i32_0 : i32, i32
  }
  func.func @transform_5(%arg0: i32) -> (i32, i32) {
    %c0_i32 = arith.constant 0 : i32
    %c0_i32_0 = arith.constant 0 : i32
    %c0_i32_1 = arith.constant 0 : i32
    return %c0_i32, %c0_i32_0 : i32, i32
  }
  func.func @transform_6(%arg0: i32) -> (i32, i32) {
    %c0_i32 = arith.constant 0 : i32
    %c0_i32_0 = arith.constant 0 : i32
    %c0_i32_1 = arith.constant 0 : i32
    return %c0_i32, %c0_i32_0 : i32, i32
  }
  func.func @transform_7(%arg0: i32) -> (i32, i32) {
    %c0_i32 = arith.constant 0 : i32
    %c0_i32_0 = arith.constant 0 : i32
    return %arg0, %c0_i32 : i32, i32
  }
  func.func @transform_8(%arg0: i32) -> (i32, i32) {
    %c0_i32 = arith.constant 0 : i32
    %c0_i32_0 = arith.constant 0 : i32
    return %arg0, %c0_i32 : i32, i32
  }
}

</mosaic_0001>

<llo_original>
// kernel: _actor_forward_impl.1
$region0: #{_actor_forward_impl.1}
  #allocation0 [shape = 'u32[]', space=smem, size = 0x4, offset = 0x4, fixed_abs, tag = 'smem constant byte address 0x4 - core index']
  #allocation1 [shape = 'u32[144,128]{1,0:T(1,128)}', space=vmem, size = 0x12000, scoped, tag = 'internal scratch']
  %s0 = inlined_call_operand.vmem [shape: bf16[8,8], index: 0, kind: input, shape index: {}]
  %s1 = inlined_call_operand.vmem [shape: bf16[8,256], index: 1, kind: input, shape index: {}]
  %s2 = inlined_call_operand.vmem [shape: f32[1,256], index: 2, kind: input, shape index: {}]
  %s3 = inlined_call_operand.vmem [shape: bf16[256,256], index: 3, kind: input, shape index: {}]
  %s4 = inlined_call_operand.vmem [shape: f32[1,256], index: 4, kind: input, shape index: {}]
  %s5 = inlined_call_operand.vmem [shape: bf16[256,256], index: 5, kind: input, shape index: {}]
  %s6 = inlined_call_operand.vmem [shape: f32[1,256], index: 6, kind: input, shape index: {}]
  %s7 = inlined_call_operand.vmem [shape: f32[8,128], index: 7, kind: output, shape index: {0}]
  %s8 = inlined_call_operand.vmem [shape: f32[8,128], index: 8, kind: output, shape index: {1}]
  %9 = xla_tuple %s7, %s8
  %s10 = sld [smem:[#allocation0]]
  $region46: #{_actor_forward_impl.1} parent=0
    _
  %s12 = ssub.s32 1, %s10
  %s13 = scalar_select 0, %s12, %s10
  // Predicated region
  $region2: #{_actor_forward_impl.1} parent=0 // pred_check
    _
  $region3: #{_actor_forward_impl.1} parent=0 // pred_check_branch
    %15 = sbr.rel (0) target = $region5
  $region4: #{_actor_forward_impl.1} parent=0 // pred_region
    _
  $region5: #{_actor_forward_impl.1} parent=0 // pred_fallthru
    _
  // Predicated region
  $region6: #{_actor_forward_impl.1} parent=0 // pred_check
    _
  $region7: #{_actor_forward_impl.1} parent=0 // pred_check_branch
    %17 = sbr.rel (0) target = $region9
  $region8: #{_actor_forward_impl.1} parent=0 // pred_region
    _
  $region9: #{_actor_forward_impl.1} parent=0 // pred_fallthru
    _
  // Predicated region
  $region10: #{_actor_forward_impl.1} parent=0 // pred_check
    _
  $region11: #{_actor_forward_impl.1} parent=0 // pred_check_branch
    %19 = sbr.rel (0) target = $region13
  $region12: #{_actor_forward_impl.1} parent=0 // pred_region
    _
  $region13: #{_actor_forward_impl.1} parent=0 // pred_fallthru
    _
  // Predicated region
  $region14: #{_actor_forward_impl.1} parent=0 // pred_check
    _
  $region15: #{_actor_forward_impl.1} parent=0 // pred_check_branch
    %21 = sbr.rel (0) target = $region17
  $region16: #{_actor_forward_impl.1} parent=0 // pred_region
    _
  $region17: #{_actor_forward_impl.1} parent=0 // pred_fallthru
    _
  // Predicated region
  $region18: #{_actor_forward_impl.1} parent=0 // pred_check
    _
  $region19: #{_actor_forward_impl.1} parent=0 // pred_check_branch
    %23 = sbr.rel (0) target = $region21
  $region20: #{_actor_forward_impl.1} parent=0 // pred_region
    _
  $region21: #{_actor_forward_impl.1} parent=0 // pred_fallthru
    _
  // Predicated region
  $region22: #{_actor_forward_impl.1} parent=0 // pred_check
    _
  $region23: #{_actor_forward_impl.1} parent=0 // pred_check_branch
    %25 = sbr.rel (0) target = $region25
  $region24: #{_actor_forward_impl.1} parent=0 // pred_region
    _
  $region25: #{_actor_forward_impl.1} parent=0 // pred_fallthru
    _
  // Predicated region
  $region26: #{_actor_forward_impl.1} parent=0 // pred_check
    _
  $region27: #{_actor_forward_impl.1} parent=0 // pred_check_branch
    %27 = sbr.rel (0) target = $region29
  $region28: #{_actor_forward_impl.1} parent=0 // pred_region
    _
  $region29: #{_actor_forward_impl.1} parent=0 // pred_fallthru
    _
  %v29 = vld [vmem:[%s0] sm:$0xf]
  %v30 = vld [vmem:[%s1] sm:$0xff]
  %v31 = vld [vmem:[%s2] sm:$0x3]
  %v33 = vlaneseq
  %v34 = vshrl.u32 %v33, 7
  %v35 = vsub.s32 0, %v34
  %v36 = vrot.slane %v31, %v35
  %v37 = vlaneseq
  %v38 = vshrl.u32 %v37, 7
  %v39 = vsub.s32 1, %v38
  %v40 = vrot.slane %v31, %v39
  %v44 = vunpack.c.l.b16 %v30
  %v45 = vunpack.c.h.b16 %v30
  %v46 = vpack.c.b16 %v44, %v44
  %v47 = vpack.c.b16 %v45, %v45
  %vm48 = vcmask 64512
  %v50 = vsel %vm48, %v29, 0
  %vm52 = vcmask 1043456
  %v54 = vsel %vm52, %v46, 0
  %v57 = vsel %vm52, %v47, 0
  %59 = vmatprep.subr.bf16.mxu0 %v57
  %60 = vmatpush1.bf16.msra.mxu0 %v54
  %61 = vmatprep.subr.bf16.mxu0 0
  %62 = vmatpush1.bf16.msra.mxu0 0
  %63 = vmatprep.subr.bf16.mxu0 0
  %64 = vmatpush1.bf16.msra.mxu0 0
  %65 = vmatprep.subr.bf16.mxu0 0
  %66 = vmatpush1.bf16.msra.mxu0 0
  %67 = vmatprep.subr.bf16.mxu0 0
  %68 = vmatpush1.bf16.msra.mxu0 0
  %69 = vmatprep.subr.bf16.mxu0 0
  %70 = vmatpush1.bf16.msra.mxu0 0
  %71 = vmatprep.subr.bf16.mxu0 0
  %72 = vmatpush1.bf16.msra.mxu0 0
  %73 = vmatprep.subr.bf16.mxu0 0
  %74 = vmatpush1.bf16.msra.mxu0 0
  %75 = vmatprep.subr.bf16.mxu0 0
  %76 = vmatpush1.bf16.msra.mxu0 0
  %77 = vmatprep.subr.bf16.mxu0 0
  %78 = vmatpush1.bf16.msra.mxu0 0
  %79 = vmatprep.subr.bf16.mxu0 0
  %80 = vmatpush1.bf16.msra.mxu0 0
  %81 = vmatprep.subr.bf16.mxu0 0
  %82 = vmatpush1.bf16.msra.mxu0 0
  %83 = vmatprep.subr.bf16.mxu0 0
  %84 = vmatpush1.bf16.msra.mxu0 0
  %85 = vmatprep.subr.bf16.mxu0 0
  %86 = vmatpush1.bf16.msra.mxu0 0
  %87 = vmatprep.subr.bf16.mxu0 0
  %88 = vmatpush1.bf16.msra.mxu0 0
  %89 = vmatprep.subr.bf16.mxu0 0
  %90 = vmatpush1.bf16.msra.mxu0 0
  %91 = vmatprep.mubr.bf16.mxu0 0
  %92 = vmatmul.mubr.bf16.gmra.mrb[0].mxu0 %v50
  %v93 = vpop.f32.mrb[0].mxu0
  %v94 = vadd.f32 %v36, %v93
  %v95 = vpop.f32.mrb[0].mxu0
  %v96 = vadd.f32 %v40, %v95
  %v97 = vpop.f32.mrb[0].mxu0
  %v98 = vpop.f32.mrb[0].mxu0
  %99 = vdwg.mxu0
  %v100 = vmax.f32 %v94, 0.0
  %v101 = vmax.f32 %v96, 0.0
  %v102 = vpack.c.bf16 %v100, %v100
  %v103 = vpack.c.bf16 %v101, %v101
  %v104 = vld [vmem:[%s3] sm:$0xff]
  %v105 = vld [vmem:[%s3 + $0x8] sm:$0xff]
  %v106 = vld [vmem:[%s3 + $0x10] sm:$0xff]
  %v107 = vld [vmem:[%s3 + $0x18] sm:$0xff]
  %v108 = vld [vmem:[%s3 + $0x20] sm:$0xff]
  %v109 = vld [vmem:[%s3 + $0x28] sm:$0xff]
  %v110 = vld [vmem:[%s3 + $0x30] sm:$0xff]
  %v111 = vld [vmem:[%s3 + $0x38] sm:$0xff]
  %v112 = vld [vmem:[%s3 + $0x40] sm:$0xff]
  %v113 = vld [vmem:[%s3 + $0x48] sm:$0xff]
  %v114 = vld [vmem:[%s3 + $0x50] sm:$0xff]
  %v115 = vld [vmem:[%s3 + $0x58] sm:$0xff]
  %v116 = vld [vmem:[%s3 + $0x60] sm:$0xff]
  %v117 = vld [vmem:[%s3 + $0x68] sm:$0xff]
  %v118 = vld [vmem:[%s3 + $0x70] sm:$0xff]
  %v119 = vld [vmem:[%s3 + $0x78] sm:$0xff]
  %v120 = vld [vmem:[%s3 + $0x80] sm:$0xff]
  %v121 = vld [vmem:[%s3 + $0x88] sm:$0xff]
  %v122 = vld [vmem:[%s3 + $0x90] sm:$0xff]
  %v123 = vld [vmem:[%s3 + $0x98] sm:$0xff]
  %v124 = vld [vmem:[%s3 + $0xa0] sm:$0xff]
  %v125 = vld [vmem:[%s3 + $0xa8] sm:$0xff]
  %v126 = vld [vmem:[%s3 + $0xb0] sm:$0xff]
  %v127 = vld [vmem:[%s3 + $0xb8] sm:$0xff]
  %v128 = vld [vmem:[%s3 + $0xc0] sm:$0xff]
  %v129 = vld [vmem:[%s3 + $0xc8] sm:$0xff]
  %v130 = vld [vmem:[%s3 + $0xd0] sm:$0xff]
  %v131 = vld [vmem:[%s3 + $0xd8] sm:$0xff]
  %v132 = vld [vmem:[%s3 + $0xe0] sm:$0xff]
  %v133 = vld [vmem:[%s3 + $0xe8] sm:$0xff]
  %v134 = vld [vmem:[%s3 + $0xf0] sm:$0xff]
  %v135 = vld [vmem:[%s3 + $0xf8] sm:$0xff]
  %v136 = vld [vmem:[%s4] sm:$0x3]
  %v138 = vlaneseq
  %v139 = vshrl.u32 %v138, 7
  %v140 = vsub.s32 0, %v139
  %v141 = vrot.slane %v136, %v140
  %v142 = vlaneseq
  %v143 = vshrl.u32 %v142, 7
  %v144 = vsub.s32 1, %v143
  %v145 = vrot.slane %v136, %v144
  %v180 = vunpack.c.l.b16 %v104
  %v181 = vunpack.c.h.b16 %v104
  %v182 = vunpack.c.l.b16 %v105
  %v183 = vunpack.c.h.b16 %v105
  %v184 = vunpack.c.l.b16 %v106
  %v185 = vunpack.c.h.b16 %v106
  %v186 = vunpack.c.l.b16 %v107
  %v187 = vunpack.c.h.b16 %v107
  %v188 = vunpack.c.l.b16 %v108
  %v189 = vunpack.c.h.b16 %v108
  %v190 = vunpack.c.l.b16 %v109
  %v191 = vunpack.c.h.b16 %v109
  %v192 = vunpack.c.l.b16 %v110
  %v193 = vunpack.c.h.b16 %v110
  %v194 = vunpack.c.l.b16 %v111
  %v195 = vunpack.c.h.b16 %v111
  %v196 = vunpack.c.l.b16 %v112
  %v197 = vunpack.c.h.b16 %v112
  %v198 = vunpack.c.l.b16 %v113
  %v199 = vunpack.c.h.b16 %v113
  %v200 = vunpack.c.l.b16 %v114
  %v201 = vunpack.c.h.b16 %v114
  %v202 = vunpack.c.l.b16 %v115
  %v203 = vunpack.c.h.b16 %v115
  %v204 = vunpack.c.l.b16 %v116
  %v205 = vunpack.c.h.b16 %v116
  %v206 = vunpack.c.l.b16 %v117
  %v207 = vunpack.c.h.b16 %v117
  %v208 = vunpack.c.l.b16 %v118
  %v209 = vunpack.c.h.b16 %v118
  %v210 = vunpack.c.l.b16 %v119
  %v211 = vunpack.c.h.b16 %v119
  %v212 = vunpack.c.l.b16 %v120
  %v213 = vunpack.c.h.b16 %v120
  %v214 = vunpack.c.l.b16 %v121
  %v215 = vunpack.c.h.b16 %v121
  %v216 = vunpack.c.l.b16 %v122
  %v217 = vunpack.c.h.b16 %v122
  %v218 = vunpack.c.l.b16 %v123
  %v219 = vunpack.c.h.b16 %v123
  %v220 = vunpack.c.l.b16 %v124
  %v221 = vunpack.c.h.b16 %v124
  %v222 = vunpack.c.l.b16 %v125
  %v223 = vunpack.c.h.b16 %v125
  %v224 = vunpack.c.l.b16 %v126
  %v225 = vunpack.c.h.b16 %v126
  %v226 = vunpack.c.l.b16 %v127
  %v227 = vunpack.c.h.b16 %v127
  %v228 = vunpack.c.l.b16 %v128
  %v229 = vunpack.c.h.b16 %v128
  %v230 = vunpack.c.l.b16 %v129
  %v231 = vunpack.c.h.b16 %v129
  %v232 = vunpack.c.l.b16 %v130
  %v233 = vunpack.c.h.b16 %v130
  %v234 = vunpack.c.l.b16 %v131
  %v235 = vunpack.c.h.b16 %v131
  %v236 = vunpack.c.l.b16 %v132
  %v237 = vunpack.c.h.b16 %v132
  %v238 = vunpack.c.l.b16 %v133
  %v239 = vunpack.c.h.b16 %v133
  %v240 = vunpack.c.l.b16 %v134
  %v241 = vunpack.c.h.b16 %v134
  %v242 = vunpack.c.l.b16 %v135
  %v243 = vunpack.c.h.b16 %v135
  %v244 = vpack.c.b16 %v182, %v180
  %v245 = vpack.c.b16 %v183, %v181
  %v246 = vpack.c.b16 %v186, %v184
  %v247 = vpack.c.b16 %v187, %v185
  %v248 = vpack.c.b16 %v190, %v188
  %v249 = vpack.c.b16 %v191, %v189
  %v250 = vpack.c.b16 %v194, %v192
  %v251 = vpack.c.b16 %v195, %v193
  %v252 = vpack.c.b16 %v198, %v196
  %v253 = vpack.c.b16 %v199, %v197
  %v254 = vpack.c.b16 %v202, %v200
  %v255 = vpack.c.b16 %v203, %v201
  %v256 = vpack.c.b16 %v206, %v204
  %v257 = vpack.c.b16 %v207, %v205
  %v258 = vpack.c.b16 %v210, %v208
  %v259 = vpack.c.b16 %v211, %v209
  %v260 = vpack.c.b16 %v214, %v212
  %v261 = vpack.c.b16 %v215, %v213
  %v262 = vpack.c.b16 %v218, %v216
  %v263 = vpack.c.b16 %v219, %v217
  %v264 = vpack.c.b16 %v222, %v220
  %v265 = vpack.c.b16 %v223, %v221
  %v266 = vpack.c.b16 %v226, %v224
  %v267 = vpack.c.b16 %v227, %v225
  %v268 = vpack.c.b16 %v230, %v228
  %v269 = vpack.c.b16 %v231, %v229
  %v270 = vpack.c.b16 %v234, %v232
  %v271 = vpack.c.b16 %v235, %v233
  %v272 = vpack.c.b16 %v238, %v236
  %v273 = vpack.c.b16 %v239, %v237
  %v274 = vpack.c.b16 %v242, %v240
  %v275 = vpack.c.b16 %v243, %v241
  %308 = vmatprep.subr.bf16.mxu0 %v245
  %309 = vmatpush1.bf16.msra.mxu0 %v244
  %310 = vmatprep.subr.bf16.mxu0 %v247
  %311 = vmatpush1.bf16.msra.mxu0 %v246
  %312 = vmatprep.subr.bf16.mxu0 %v249
  %313 = vmatpush1.bf16.msra.mxu0 %v248
  %314 = vmatprep.subr.bf16.mxu0 %v251
  %315 = vmatpush1.bf16.msra.mxu0 %v250
  %316 = vmatprep.subr.bf16.mxu0 %v253
  %317 = vmatpush1.bf16.msra.mxu0 %v252
  %318 = vmatprep.subr.bf16.mxu0 %v255
  %319 = vmatpush1.bf16.msra.mxu0 %v254
  %320 = vmatprep.subr.bf16.mxu0 %v257
  %321 = vmatpush1.bf16.msra.mxu0 %v256
  %322 = vmatprep.subr.bf16.mxu0 %v259
  %323 = vmatpush1.bf16.msra.mxu0 %v258
  %324 = vmatprep.subr.bf16.mxu0 %v261
  %325 = vmatpush1.bf16.msra.mxu0 %v260
  %326 = vmatprep.subr.bf16.mxu0 %v263
  %327 = vmatpush1.bf16.msra.mxu0 %v262
  %328 = vmatprep.subr.bf16.mxu0 %v265
  %329 = vmatpush1.bf16.msra.mxu0 %v264
  %330 = vmatprep.subr.bf16.mxu0 %v267
  %331 = vmatpush1.bf16.msra.mxu0 %v266
  %332 = vmatprep.subr.bf16.mxu0 %v269
  %333 = vmatpush1.bf16.msra.mxu0 %v268
  %334 = vmatprep.subr.bf16.mxu0 %v271
  %335 = vmatpush1.bf16.msra.mxu0 %v270
  %336 = vmatprep.subr.bf16.mxu0 %v273
  %337 = vmatpush1.bf16.msra.mxu0 %v272
  %338 = vmatprep.subr.bf16.mxu0 %v275
  %339 = vmatpush1.bf16.msra.mxu0 %v274
  %340 = vmatprep.mubr.bf16.mxu0 %v103
  %341 = vmatmul.mubr.bf16.gmra.mrb[0].mxu0 %v102
  %v342 = vpop.f32.mrb[0].mxu0
  %v343 = vadd.f32 %v141, %v342
  %v344 = vpop.f32.mrb[0].mxu0
  %v345 = vadd.f32 %v145, %v344
  %v346 = vpop.f32.mrb[0].mxu0
  %v347 = vpop.f32.mrb[0].mxu0
  %348 = vdwg.mxu0
  %v349 = vmax.f32 %v343, 0.0
  %v350 = vmax.f32 %v345, 0.0
  %v351 = vpack.c.bf16 %v349, %v349
  %v352 = vpack.c.bf16 %v350, %v350
  %v353 = vld [vmem:[%s5] sm:$0xff]
  %v354 = vld [vmem:[%s5 + $0x8] sm:$0xff]
  %v355 = vld [vmem:[%s5 + $0x10] sm:$0xff]
  %v356 = vld [vmem:[%s5 + $0x18] sm:$0xff]
  %v357 = vld [vmem:[%s5 + $0x20] sm:$0xff]
  %v358 = vld [vmem:[%s5 + $0x28] sm:$0xff]
  %v359 = vld [vmem:[%s5 + $0x30] sm:$0xff]
  %v360 = vld [vmem:[%s5 + $0x38] sm:$0xff]
  %v361 = vld [vmem:[%s5 + $0x40] sm:$0xff]
  %v362 = vld [vmem:[%s5 + $0x48] sm:$0xff]
  %v363 = vld [vmem:[%s5 + $0x50] sm:$0xff]
  %v364 = vld [vmem:[%s5 + $0x58] sm:$0xff]
  %v365 = vld [vmem:[%s5 + $0x60] sm:$0xff]
  %v366 = vld [vmem:[%s5 + $0x68] sm:$0xff]
  %v367 = vld [vmem:[%s5 + $0x70] sm:$0xff]
  %v368 = vld [vmem:[%s5 + $0x78] sm:$0xff]
  %v369 = vld [vmem:[%s5 + $0x80] sm:$0xff]
  %v370 = vld [vmem:[%s5 + $0x88] sm:$0xff]
  %v371 = vld [vmem:[%s5 + $0x90] sm:$0xff]
  %v372 = vld [vmem:[%s5 + $0x98] sm:$0xff]
  %v373 = vld [vmem:[%s5 + $0xa0] sm:$0xff]
  %v374 = vld [vmem:[%s5 + $0xa8] sm:$0xff]
  %v375 = vld [vmem:[%s5 + $0xb0] sm:$0xff]
  %v376 = vld [vmem:[%s5 + $0xb8] sm:$0xff]
  %v377 = vld [vmem:[%s5 + $0xc0] sm:$0xff]
  %v378 = vld [vmem:[%s5 + $0xc8] sm:$0xff]
  %v379 = vld [vmem:[%s5 + $0xd0] sm:$0xff]
  %v380 = vld [vmem:[%s5 + $0xd8] sm:$0xff]
  %v381 = vld [vmem:[%s5 + $0xe0] sm:$0xff]
  %v382 = vld [vmem:[%s5 + $0xe8] sm:$0xff]
  %v383 = vld [vmem:[%s5 + $0xf0] sm:$0xff]
  %v384 = vld [vmem:[%s5 + $0xf8] sm:$0xff]
  %v385 = vld [vmem:[%s6] sm:$0x3]
  %v387 = vlaneseq
  %v388 = vshrl.u32 %v387, 7
  %v389 = vsub.s32 0, %v388
  %v390 = vrot.slane %v385, %v389
  %v391 = vlaneseq
  %v392 = vshrl.u32 %v391, 7
  %v393 = vsub.s32 1, %v392
  %v394 = vrot.slane %v385, %v393
  %v429 = vunpack.c.l.b16 %v353
  %v430 = vunpack.c.h.b16 %v353
  %v431 = vunpack.c.l.b16 %v354
  %v432 = vunpack.c.h.b16 %v354
  %v433 = vunpack.c.l.b16 %v355
  %v434 = vunpack.c.h.b16 %v355
  %v435 = vunpack.c.l.b16 %v356
  %v436 = vunpack.c.h.b16 %v356
  %v437 = vunpack.c.l.b16 %v357
  %v438 = vunpack.c.h.b16 %v357
  %v439 = vunpack.c.l.b16 %v358
  %v440 = vunpack.c.h.b16 %v358
  %v441 = vunpack.c.l.b16 %v359
  %v442 = vunpack.c.h.b16 %v359
  %v443 = vunpack.c.l.b16 %v360
  %v444 = vunpack.c.h.b16 %v360
  %v445 = vunpack.c.l.b16 %v361
  %v446 = vunpack.c.h.b16 %v361
  %v447 = vunpack.c.l.b16 %v362
  %v448 = vunpack.c.h.b16 %v362
  %v449 = vunpack.c.l.b16 %v363
  %v450 = vunpack.c.h.b16 %v363
  %v451 = vunpack.c.l.b16 %v364
  %v452 = vunpack.c.h.b16 %v364
  %v453 = vunpack.c.l.b16 %v365
  %v454 = vunpack.c.h.b16 %v365
  %v455 = vunpack.c.l.b16 %v366
  %v456 = vunpack.c.h.b16 %v366
  %v457 = vunpack.c.l.b16 %v367
  %v458 = vunpack.c.h.b16 %v367
  %v459 = vunpack.c.l.b16 %v368
  %v460 = vunpack.c.h.b16 %v368
  %v461 = vunpack.c.l.b16 %v369
  %v462 = vunpack.c.h.b16 %v369
  %v463 = vunpack.c.l.b16 %v370
  %v464 = vunpack.c.h.b16 %v370
  %v465 = vunpack.c.l.b16 %v371
  %v466 = vunpack.c.h.b16 %v371
  %v467 = vunpack.c.l.b16 %v372
  %v468 = vunpack.c.h.b16 %v372
  %v469 = vunpack.c.l.b16 %v373
  %v470 = vunpack.c.h.b16 %v373
  %v471 = vunpack.c.l.b16 %v374
  %v472 = vunpack.c.h.b16 %v374
  %v473 = vunpack.c.l.b16 %v375
  %v474 = vunpack.c.h.b16 %v375
  %v475 = vunpack.c.l.b16 %v376
  %v476 = vunpack.c.h.b16 %v376
  %v477 = vunpack.c.l.b16 %v377
  %v478 = vunpack.c.h.b16 %v377
  %v479 = vunpack.c.l.b16 %v378
  %v480 = vunpack.c.h.b16 %v378
  %v481 = vunpack.c.l.b16 %v379
  %v482 = vunpack.c.h.b16 %v379
  %v483 = vunpack.c.l.b16 %v380
  %v484 = vunpack.c.h.b16 %v380
  %v485 = vunpack.c.l.b16 %v381
  %v486 = vunpack.c.h.b16 %v381
  %v487 = vunpack.c.l.b16 %v382
  %v488 = vunpack.c.h.b16 %v382
  %v489 = vunpack.c.l.b16 %v383
  %v490 = vunpack.c.h.b16 %v383
  %v491 = vunpack.c.l.b16 %v384
  %v492 = vunpack.c.h.b16 %v384
  %v493 = vpack.c.b16 %v431, %v429
  %v494 = vpack.c.b16 %v432, %v430
  %v495 = vpack.c.b16 %v435, %v433
  %v496 = vpack.c.b16 %v436, %v434
  %v497 = vpack.c.b16 %v439, %v437
  %v498 = vpack.c.b16 %v440, %v438
  %v499 = vpack.c.b16 %v443, %v441
  %v500 = vpack.c.b16 %v444, %v442
  %v501 = vpack.c.b16 %v447, %v445
  %v502 = vpack.c.b16 %v448, %v446
  %v503 = vpack.c.b16 %v451, %v449
  %v504 = vpack.c.b16 %v452, %v450
  %v505 = vpack.c.b16 %v455, %v453
  %v506 = vpack.c.b16 %v456, %v454
  %v507 = vpack.c.b16 %v459, %v457
  %v508 = vpack.c.b16 %v460, %v458
  %v509 = vpack.c.b16 %v463, %v461
  %v510 = vpack.c.b16 %v464, %v462
  %v511 = vpack.c.b16 %v467, %v465
  %v512 = vpack.c.b16 %v468, %v466
  %v513 = vpack.c.b16 %v471, %v469
  %v514 = vpack.c.b16 %v472, %v470
  %v515 = vpack.c.b16 %v475, %v473
  %v516 = vpack.c.b16 %v476, %v474
  %v517 = vpack.c.b16 %v479, %v477
  %v518 = vpack.c.b16 %v480, %v478
  %v519 = vpack.c.b16 %v483, %v481
  %v520 = vpack.c.b16 %v484, %v482
  %v521 = vpack.c.b16 %v487, %v485
  %v522 = vpack.c.b16 %v488, %v486
  %v523 = vpack.c.b16 %v491, %v489
  %v524 = vpack.c.b16 %v492, %v490
  %557 = vmatprep.subr.bf16.mxu0 %v494
  %558 = vmatpush1.bf16.msra.mxu0 %v493
  %559 = vmatprep.subr.bf16.mxu0 %v496
  %560 = vmatpush1.bf16.msra.mxu0 %v495
  %561 = vmatprep.subr.bf16.mxu0 %v498
  %562 = vmatpush1.bf16.msra.mxu0 %v497
  %563 = vmatprep.subr.bf16.mxu0 %v500
  %564 = vmatpush1.bf16.msra.mxu0 %v499
  %565 = vmatprep.subr.bf16.mxu0 %v502
  %566 = vmatpush1.bf16.msra.mxu0 %v501
  %567 = vmatprep.subr.bf16.mxu0 %v504
  %568 = vmatpush1.bf16.msra.mxu0 %v503
  %569 = vmatprep.subr.bf16.mxu0 %v506
  %570 = vmatpush1.bf16.msra.mxu0 %v505
  %571 = vmatprep.subr.bf16.mxu0 %v508
  %572 = vmatpush1.bf16.msra.mxu0 %v507
  %573 = vmatprep.subr.bf16.mxu0 %v510
  %574 = vmatpush1.bf16.msra.mxu0 %v509
  %575 = vmatprep.subr.bf16.mxu0 %v512
  %576 = vmatpush1.bf16.msra.mxu0 %v511
  %577 = vmatprep.subr.bf16.mxu0 %v514
  %578 = vmatpush1.bf16.msra.mxu0 %v513
  %579 = vmatprep.subr.bf16.mxu0 %v516
  %580 = vmatpush1.bf16.msra.mxu0 %v515
  %581 = vmatprep.subr.bf16.mxu0 %v518
  %582 = vmatpush1.bf16.msra.mxu0 %v517
  %583 = vmatprep.subr.bf16.mxu0 %v520
  %584 = vmatpush1.bf16.msra.mxu0 %v519
  %585 = vmatprep.subr.bf16.mxu0 %v522
  %586 = vmatpush1.bf16.msra.mxu0 %v521
  %587 = vmatprep.subr.bf16.mxu0 %v524
  %588 = vmatpush1.bf16.msra.mxu0 %v523
  %589 = vmatprep.mubr.bf16.mxu0 %v352
  %590 = vmatmul.mubr.bf16.gmra.mrb[0].mxu0 %v351
  %v591 = vpop.f32.mrb[0].mxu0
  %v592 = vadd.f32 %v390, %v591
  %v593 = vpop.f32.mrb[0].mxu0
  %v594 = vadd.f32 %v394, %v593
  %v595 = vpop.f32.mrb[0].mxu0
  %v596 = vpop.f32.mrb[0].mxu0
  %597 = vdwg.mxu0
  %598 = vst [vmem:[%s7] sm:$0xff] %v592
  %v599 = vtanh.pop %v594
  %v600 = vadd.f32 %v599, 1.0
  %v601 = vmul.f32 %v600, 3.5
  %v602 = vadd.f32 %v601, -5.0
  %603 = vst [vmem:[%s8] sm:$0xff] %v602
  // Predicated region
  $region30: #{_actor_forward_impl.1} parent=0 // pred_check
    _
  $region31: #{_actor_forward_impl.1} parent=0 // pred_check_branch
    %605 = sbr.rel (0) target = $region33
  $region32: #{_actor_forward_impl.1} parent=0 // pred_region
    _
  $region33: #{_actor_forward_impl.1} parent=0 // pred_fallthru
    _
  // Predicated region
  $region34: #{_actor_forward_impl.1} parent=0 // pred_check
    _
  $region35: #{_actor_forward_impl.1} parent=0 // pred_check_branch
    %607 = sbr.rel (0) target = $region37
  $region36: #{_actor_forward_impl.1} parent=0 // pred_region
    _
  $region37: #{_actor_forward_impl.1} parent=0 // pred_fallthru
    _
  // Predicated region
  $region38: #{_actor_forward_impl.1} parent=0 // pred_check
    _
  $region39: #{_actor_forward_impl.1} parent=0 // pred_check_branch
    %609 = sbr.rel (0) target = $region41
  $region40: #{_actor_forward_impl.1} parent=0 // pred_region
    _
  $region41: #{_actor_forward_impl.1} parent=0 // pred_fallthru
    _
  // Predicated region
  $region42: #{_actor_forward_impl.1} parent=0 // pred_check
    _
  $region43: #{_actor_forward_impl.1} parent=0 // pred_check_branch
    %611 = sbr.rel (0) target = $region45
  $region44: #{_actor_forward_impl.1} parent=0 // pred_region
    _
  $region45: #{_actor_forward_impl.1} parent=0 // pred_fallthru
    _

</llo_original>
